<compile_context>
chip_gen: v5e
topology: v5e:2x2
jax: 0.10.0
libtpu: 0.0.40
codegen_flags: <defaults>
</compile_context>

<pallas_src>
import functools

import jax
import jax.numpy as jnp
from jax.experimental import pallas as pl
from jax.experimental.pallas import tpu as pltpu


LANE = 128      # lane width: last dims padded to a multiple of this
SUBLANE = 8     # sublane width: batch tile must be a multiple of this


def _round_up(x, m):
    return ((x + m - 1) // m) * m


def _pad2(x, rows, cols):
    r, c = x.shape
    return jnp.pad(x, ((0, rows - r), (0, cols - c)))


def qnet_kernel(x_ref,
                w1_ref, b1_ref,
                w2_ref, b2_ref,
                w3_ref, b3_ref,
                w4_ref, b4_ref,
                o_ref):
    # Hot path: 4 MXU matmuls (bf16 operands, f32 accumulate) + VPU bias/ReLU.
    h = jnp.dot(x_ref[...], w1_ref[...],
                preferred_element_type=jnp.float32) + b1_ref[...]
    h = jnp.maximum(h, 0.0)
    h = jnp.dot(h.astype(jnp.bfloat16), w2_ref[...],
                preferred_element_type=jnp.float32) + b2_ref[...]
    h = jnp.maximum(h, 0.0)
    h = jnp.dot(h.astype(jnp.bfloat16), w3_ref[...],
                preferred_element_type=jnp.float32) + b3_ref[...]
    h = jnp.maximum(h, 0.0)
    h = jnp.dot(h.astype(jnp.bfloat16), w4_ref[...],
                preferred_element_type=jnp.float32) + b4_ref[...]
    o_ref[...] = h.astype(o_ref.dtype)


def qnet_forward(state, params, *, block_b=512):
    """state: (B, state_dim) f32; params: 4x (W (in,out), b (1,out)) f32."""
    (w1, b1), (w2, b2), (w3, b3), (w4, b4) = params
    B, state_dim = state.shape
    mid_dim = w1.shape[1]
    action_dim = w4.shape[1]

    # Pad feature dims to full 128-lane width; batch tile to sublane multiple.
    sd_p = _round_up(state_dim, LANE)
    md_p = _round_up(mid_dim, LANE)
    ad_p = _round_up(action_dim, LANE)
    tb = min(block_b, _round_up(B, SUBLANE))
    b_p = _round_up(B, tb)

    # Zero-pad once and cast MXU operands to bf16 (padded rows/cols are exact zeros).
    x_p = _pad2(state, b_p, sd_p).astype(jnp.bfloat16)
    w1_p = _pad2(w1, sd_p, md_p).astype(jnp.bfloat16)
    w2_p = _pad2(w2, md_p, md_p).astype(jnp.bfloat16)
    w3_p = _pad2(w3, md_p, md_p).astype(jnp.bfloat16)
    w4_p = _pad2(w4, md_p, ad_p).astype(jnp.bfloat16)
    b1_p = _pad2(b1, 1, md_p)   # biases stay f32 (added into the f32 accumulator)
    b2_p = _pad2(b2, 1, md_p)
    b3_p = _pad2(b3, 1, md_p)
    b4_p = _pad2(b4, 1, ad_p)

    grid = (b_p // tb,)

    def const_spec(shape):
        # Whole array, same block every grid step -> stays resident in VMEM.
        return pl.BlockSpec(shape, lambda i: (0, 0))

    flops = 2 * B * (state_dim * mid_dim + 2 * mid_dim * mid_dim
                     + mid_dim * action_dim)
    bytes_accessed = (
        x_p.size * 2
        + (w1_p.size + w2_p.size + w3_p.size + w4_p.size) * 2
        + (b1_p.size + b2_p.size + b3_p.size + b4_p.size) * 4
        + b_p * ad_p * 4)

    out_p = pl.pallas_call(
        qnet_kernel,
        out_shape=jax.ShapeDtypeStruct((b_p, ad_p), jnp.float32),
        grid=grid,
        in_specs=[
            pl.BlockSpec((tb, sd_p), lambda i: (i, 0)),   # batch-tiled activations
            const_spec((sd_p, md_p)), const_spec((1, md_p)),
            const_spec((md_p, md_p)), const_spec((1, md_p)),
            const_spec((md_p, md_p)), const_spec((1, md_p)),
            const_spec((md_p, ad_p)), const_spec((1, ad_p)),
        ],
        out_specs=pl.BlockSpec((tb, ad_p), lambda i: (i, 0)),
        compiler_params=pltpu.CompilerParams(
            dimension_semantics=("parallel",),        # lets v7x split batch over 2 TCs
            vmem_limit_bytes=32 * 1024 * 1024,        # sized against v7x's 64 MiB VMEM
        ),
        cost_estimate=pl.CostEstimate(
            flops=flops, transcendentals=0, bytes_accessed=bytes_accessed),
    )(x_p, w1_p, b1_p, w2_p, b2_p, w3_p, b3_p, w4_p, b4_p)

    # Drop batch + lane padding outside the kernel.
    return out_p[:B, :action_dim]


def init_linear(key, fan_in, fan_out):
    # PyTorch nn.Linear-style init: U(-1/sqrt(fan_in), 1/sqrt(fan_in)).
    kw, kb = jax.random.split(key)
    bound = 1.0 / jnp.sqrt(jnp.float32(fan_in))
    w = jax.random.uniform(kw, (fan_in, fan_out), jnp.float32, -bound, bound)
    b = jax.random.uniform(kb, (1, fan_out), jnp.float32, -bound, bound)
    return w, b


def qnet_reference(state, params, compute_dtype=jnp.float32):
    h = state
    n = len(params)
    for i, (w, b) in enumerate(params):
        h = jnp.dot(h.astype(compute_dtype), w.astype(compute_dtype),
                    preferred_element_type=jnp.float32) + b
        if i < n - 1:
            h = jnp.maximum(h, 0.0)
    return h


if __name__ == "__main__":
    # Small shapes consistent with the module's forward.
    batch = 8
    state_dim = 16
    mid_dim = 32
    action_dim = 4

    key = jax.random.PRNGKey(0)
    k_x, k1, k2, k3, k4 = jax.random.split(key, 5)

    state = jax.random.normal(k_x, (batch, state_dim), jnp.float32)

    params = (
        init_linear(k1, state_dim, mid_dim),
        init_linear(k2, mid_dim, mid_dim),
        init_linear(k3, mid_dim, mid_dim),
        init_linear(k4, mid_dim, action_dim),
    )

    fwd = jax.jit(functools.partial(qnet_forward, block_b=512))
    out = jax.block_until_ready(fwd(state, params))
    assert out.shape == (batch, action_dim), out.shape

    # Match: tight vs bf16-operand reference, loose vs pure-f32 reference.
    ref_bf16 = qnet_reference(state, params, compute_dtype=jnp.bfloat16)
    ref_f32 = qnet_reference(state, params, compute_dtype=jnp.float32)
    assert jnp.allclose(out, ref_bf16, atol=1e-3, rtol=1e-3), "mismatch vs bf16 reference"
    assert jnp.allclose(out, ref_f32, atol=5e-2, rtol=5e-2), "mismatch vs f32 reference"

    print("KERNEL_OK")
</pallas_src>

<mosaic_0001>
module attributes {stable_mosaic.version = 11 : i64} {
  func.func @qnet_kernel(%arg0: i32, %arg1: memref<8x128xbf16, #tpu.memory_space<vmem>>, %arg2: memref<128x128xbf16, #tpu.memory_space<vmem>>, %arg3: memref<1x128xf32, #tpu.memory_space<vmem>>, %arg4: memref<128x128xbf16, #tpu.memory_space<vmem>>, %arg5: memref<1x128xf32, #tpu.memory_space<vmem>>, %arg6: memref<128x128xbf16, #tpu.memory_space<vmem>>, %arg7: memref<1x128xf32, #tpu.memory_space<vmem>>, %arg8: memref<128x128xbf16, #tpu.memory_space<vmem>>, %arg9: memref<1x128xf32, #tpu.memory_space<vmem>>, %arg10: memref<8x128xf32, #tpu.memory_space<vmem>>) attributes {dimension_semantics = [#tpu.dimension_semantics<parallel>], iteration_bounds = array<i64: 1>, scalar_prefetch = 0 : i64, scratch_operands = 0 : i64, tpu.core_type = #tpu.core_type<tc>, window_params = [{transform_indices = @transform_0, window_bounds = array<i64: 8, 128>}, {pipeline_mode = #tpu.pipeline_mode<synchronous>, transform_indices = @transform_1, window_bounds = array<i64: 128, 128>}, {pipeline_mode = #tpu.pipeline_mode<synchronous>, transform_indices = @transform_2, window_bounds = array<i64: 1, 128>}, {pipeline_mode = #tpu.pipeline_mode<synchronous>, transform_indices = @transform_3, window_bounds = array<i64: 128, 128>}, {pipeline_mode = #tpu.pipeline_mode<synchronous>, transform_indices = @transform_4, window_bounds = array<i64: 1, 128>}, {pipeline_mode = #tpu.pipeline_mode<synchronous>, transform_indices = @transform_5, window_bounds = array<i64: 128, 128>}, {pipeline_mode = #tpu.pipeline_mode<synchronous>, transform_indices = @transform_6, window_bounds = array<i64: 1, 128>}, {pipeline_mode = #tpu.pipeline_mode<synchronous>, transform_indices = @transform_7, window_bounds = array<i64: 128, 128>}, {pipeline_mode = #tpu.pipeline_mode<synchronous>, transform_indices = @transform_8, window_bounds = array<i64: 1, 128>}, {transform_indices = @transform_9, window_bounds = array<i64: 8, 128>}]} {
    %c0 = arith.constant 0 : index
    %c0_0 = arith.constant 0 : index
    %0 = vector.load %arg1[%c0, %c0_0] : memref<8x128xbf16, #tpu.memory_space<vmem>>, vector<8x128xbf16>
    %c0_1 = arith.constant 0 : index
    %c0_2 = arith.constant 0 : index
    %1 = vector.load %arg2[%c0_1, %c0_2] : memref<128x128xbf16, #tpu.memory_space<vmem>>, vector<128x128xbf16>
    %cst = arith.constant dense<0.000000e+00> : vector<8x128xf32>
    %2 = tpu.matmul %0, %1, %cst {dimension_numbers = #tpu.dot_dimension_numbers<[1], [0], [0], [1], [0, 0, 1, 1], [], []>} : vector<8x128xbf16>, vector<128x128xbf16>, vector<8x128xf32> -> vector<8x128xf32>
    %c0_3 = arith.constant 0 : index
    %c0_4 = arith.constant 0 : index
    %3 = vector.load %arg3[%c0_3, %c0_4] : memref<1x128xf32, #tpu.memory_space<vmem>>, vector<1x128xf32>
    %4 = vector.broadcast %3 : vector<1x128xf32> to vector<8x128xf32>
    %5 = arith.addf %2, %4 : vector<8x128xf32>
    %cst_5 = arith.constant 0.000000e+00 : f32
    %6 = vector.broadcast %cst_5 : f32 to vector<8x128xf32>
    %7 = arith.maximumf %5, %6 : vector<8x128xf32>
    %8 = arith.truncf %7 : vector<8x128xf32> to vector<8x128xbf16>
    %c0_6 = arith.constant 0 : index
    %c0_7 = arith.constant 0 : index
    %9 = vector.load %arg4[%c0_6, %c0_7] : memref<128x128xbf16, #tpu.memory_space<vmem>>, vector<128x128xbf16>
    %cst_8 = arith.constant dense<0.000000e+00> : vector<8x128xf32>
    %10 = tpu.matmul %8, %9, %cst_8 {dimension_numbers = #tpu.dot_dimension_numbers<[1], [0], [0], [1], [0, 0, 1, 1], [], []>} : vector<8x128xbf16>, vector<128x128xbf16>, vector<8x128xf32> -> vector<8x128xf32>
    %c0_9 = arith.constant 0 : index
    %c0_10 = arith.constant 0 : index
    %11 = vector.load %arg5[%c0_9, %c0_10] : memref<1x128xf32, #tpu.memory_space<vmem>>, vector<1x128xf32>
    %12 = vector.broadcast %11 : vector<1x128xf32> to vector<8x128xf32>
    %13 = arith.addf %10, %12 : vector<8x128xf32>
    %cst_11 = arith.constant 0.000000e+00 : f32
    %14 = vector.broadcast %cst_11 : f32 to vector<8x128xf32>
    %15 = arith.maximumf %13, %14 : vector<8x128xf32>
    %16 = arith.truncf %15 : vector<8x128xf32> to vector<8x128xbf16>
    %c0_12 = arith.constant 0 : index
    %c0_13 = arith.constant 0 : index
    %17 = vector.load %arg6[%c0_12, %c0_13] : memref<128x128xbf16, #tpu.memory_space<vmem>>, vector<128x128xbf16>
    %cst_14 = arith.constant dense<0.000000e+00> : vector<8x128xf32>
    %18 = tpu.matmul %16, %17, %cst_14 {dimension_numbers = #tpu.dot_dimension_numbers<[1], [0], [0], [1], [0, 0, 1, 1], [], []>} : vector<8x128xbf16>, vector<128x128xbf16>, vector<8x128xf32> -> vector<8x128xf32>
    %c0_15 = arith.constant 0 : index
    %c0_16 = arith.constant 0 : index
    %19 = vector.load %arg7[%c0_15, %c0_16] : memref<1x128xf32, #tpu.memory_space<vmem>>, vector<1x128xf32>
    %20 = vector.broadcast %19 : vector<1x128xf32> to vector<8x128xf32>
    %21 = arith.addf %18, %20 : vector<8x128xf32>
    %cst_17 = arith.constant 0.000000e+00 : f32
    %22 = vector.broadcast %cst_17 : f32 to vector<8x128xf32>
    %23 = arith.maximumf %21, %22 : vector<8x128xf32>
    %24 = arith.truncf %23 : vector<8x128xf32> to vector<8x128xbf16>
    %c0_18 = arith.constant 0 : index
    %c0_19 = arith.constant 0 : index
    %25 = vector.load %arg8[%c0_18, %c0_19] : memref<128x128xbf16, #tpu.memory_space<vmem>>, vector<128x128xbf16>
    %cst_20 = arith.constant dense<0.000000e+00> : vector<8x128xf32>
    %26 = tpu.matmul %24, %25, %cst_20 {dimension_numbers = #tpu.dot_dimension_numbers<[1], [0], [0], [1], [0, 0, 1, 1], [], []>} : vector<8x128xbf16>, vector<128x128xbf16>, vector<8x128xf32> -> vector<8x128xf32>
    %c0_21 = arith.constant 0 : index
    %c0_22 = arith.constant 0 : index
    %27 = vector.load %arg9[%c0_21, %c0_22] : memref<1x128xf32, #tpu.memory_space<vmem>>, vector<1x128xf32>
    %28 = vector.broadcast %27 : vector<1x128xf32> to vector<8x128xf32>
    %29 = arith.addf %26, %28 : vector<8x128xf32>
    %c0_23 = arith.constant 0 : index
    %c0_24 = arith.constant 0 : index
    %30 = vector.load %arg10[%c0_23, %c0_24] : memref<8x128xf32, #tpu.memory_space<vmem>>, vector<8x128xf32>
    tpu.vector_store %arg10[%c0_23, %c0_24], %29 {strides = array<i32>} : memref<8x128xf32, #tpu.memory_space<vmem>>, vector<8x128xf32>,
    return
  }
  func.func @transform_0(%arg0: i32) -> (i32, i32) {
    %c0_i32 = arith.constant 0 : i32
    %c0_i32_0 = arith.constant 0 : i32
    return %arg0, %c0_i32 : i32, i32
  }
  func.func @transform_1(%arg0: i32) -> (i32, i32) {
    %c0_i32 = arith.constant 0 : i32
    %c0_i32_0 = arith.constant 0 : i32
    %c0_i32_1 = arith.constant 0 : i32
    return %c0_i32, %c0_i32_0 : i32, i32
  }
  func.func @transform_2(%arg0: i32) -> (i32, i32) {
    %c0_i32 = arith.constant 0 : i32
    %c0_i32_0 = arith.constant 0 : i32
    %c0_i32_1 = arith.constant 0 : i32
    return %c0_i32, %c0_i32_0 : i32, i32
  }
  func.func @transform_3(%arg0: i32) -> (i32, i32) {
    %c0_i32 = arith.constant 0 : i32
    %c0_i32_0 = arith.constant 0 : i32
    %c0_i32_1 = arith.constant 0 : i32
    return %c0_i32, %c0_i32_0 : i32, i32
  }
  func.func @transform_4(%arg0: i32) -> (i32, i32) {
    %c0_i32 = arith.constant 0 : i32
    %c0_i32_0 = arith.constant 0 : i32
    %c0_i32_1 = arith.constant 0 : i32
    return %c0_i32, %c0_i32_0 : i32, i32
  }
  func.func @transform_5(%arg0: i32) -> (i32, i32) {
    %c0_i32 = arith.constant 0 : i32
    %c0_i32_0 = arith.constant 0 : i32
    %c0_i32_1 = arith.constant 0 : i32
    return %c0_i32, %c0_i32_0 : i32, i32
  }
  func.func @transform_6(%arg0: i32) -> (i32, i32) {
    %c0_i32 = arith.constant 0 : i32
    %c0_i32_0 = arith.constant 0 : i32
    %c0_i32_1 = arith.constant 0 : i32
    return %c0_i32, %c0_i32_0 : i32, i32
  }
  func.func @transform_7(%arg0: i32) -> (i32, i32) {
    %c0_i32 = arith.constant 0 : i32
    %c0_i32_0 = arith.constant 0 : i32
    %c0_i32_1 = arith.constant 0 : i32
    return %c0_i32, %c0_i32_0 : i32, i32
  }
  func.func @transform_8(%arg0: i32) -> (i32, i32) {
    %c0_i32 = arith.constant 0 : i32
    %c0_i32_0 = arith.constant 0 : i32
    %c0_i32_1 = arith.constant 0 : i32
    return %c0_i32, %c0_i32_0 : i32, i32
  }
  func.func @transform_9(%arg0: i32) -> (i32, i32) {
    %c0_i32 = arith.constant 0 : i32
    %c0_i32_0 = arith.constant 0 : i32
    return %arg0, %c0_i32 : i32, i32
  }
}

</mosaic_0001>

<llo_original>
// kernel: qnet_forward.1
$region0: #{qnet_forward.1}
  #allocation0 [shape = 'u32[]', space=smem, size = 0x4, offset = 0x4, fixed_abs, tag = 'smem constant byte address 0x4 - core index']
  #allocation1 [shape = 'u32[72,128]{1,0:T(1,128)}', space=vmem, size = 0x9000, scoped, tag = 'internal scratch']
  %s0 = inlined_call_operand.vmem [shape: bf16[8,128], index: 0, kind: input, shape index: {}]
  %s1 = inlined_call_operand.vmem [shape: bf16[128,128], index: 1, kind: input, shape index: {}]
  %s2 = inlined_call_operand.vmem [shape: f32[1,128], index: 2, kind: input, shape index: {}]
  %s3 = inlined_call_operand.vmem [shape: bf16[128,128], index: 3, kind: input, shape index: {}]
  %s4 = inlined_call_operand.vmem [shape: f32[1,128], index: 4, kind: input, shape index: {}]
  %s5 = inlined_call_operand.vmem [shape: bf16[128,128], index: 5, kind: input, shape index: {}]
  %s6 = inlined_call_operand.vmem [shape: f32[1,128], index: 6, kind: input, shape index: {}]
  %s7 = inlined_call_operand.vmem [shape: bf16[128,128], index: 7, kind: input, shape index: {}]
  %s8 = inlined_call_operand.vmem [shape: f32[1,128], index: 8, kind: input, shape index: {}]
  %s9 = inlined_call_operand.vmem [shape: f32[8,128], index: 9, kind: output, shape index: {}]
  %s10 = sld [smem:[#allocation0]]
  $region46: #{qnet_forward.1} parent=0
    _
  %s12 = ssub.s32 1, %s10
  %s13 = scalar_select 0, %s12, %s10
  // Predicated region
  $region2: #{qnet_forward.1} parent=0 // pred_check
    _
  $region3: #{qnet_forward.1} parent=0 // pred_check_branch
    %15 = sbr.rel (0) target = $region5
  $region4: #{qnet_forward.1} parent=0 // pred_region
    _
  $region5: #{qnet_forward.1} parent=0 // pred_fallthru
    _
  // Predicated region
  $region6: #{qnet_forward.1} parent=0 // pred_check
    _
  $region7: #{qnet_forward.1} parent=0 // pred_check_branch
    %17 = sbr.rel (0) target = $region9
  $region8: #{qnet_forward.1} parent=0 // pred_region
    _
  $region9: #{qnet_forward.1} parent=0 // pred_fallthru
    _
  // Predicated region
  $region10: #{qnet_forward.1} parent=0 // pred_check
    _
  $region11: #{qnet_forward.1} parent=0 // pred_check_branch
    %19 = sbr.rel (0) target = $region13
  $region12: #{qnet_forward.1} parent=0 // pred_region
    _
  $region13: #{qnet_forward.1} parent=0 // pred_fallthru
    _
  // Predicated region
  $region14: #{qnet_forward.1} parent=0 // pred_check
    _
  $region15: #{qnet_forward.1} parent=0 // pred_check_branch
    %21 = sbr.rel (0) target = $region17
  $region16: #{qnet_forward.1} parent=0 // pred_region
    _
  $region17: #{qnet_forward.1} parent=0 // pred_fallthru
    _
  // Predicated region
  $region18: #{qnet_forward.1} parent=0 // pred_check
    _
  $region19: #{qnet_forward.1} parent=0 // pred_check_branch
    %23 = sbr.rel (0) target = $region21
  $region20: #{qnet_forward.1} parent=0 // pred_region
    _
  $region21: #{qnet_forward.1} parent=0 // pred_fallthru
    _
  // Predicated region
  $region22: #{qnet_forward.1} parent=0 // pred_check
    _
  $region23: #{qnet_forward.1} parent=0 // pred_check_branch
    %25 = sbr.rel (0) target = $region25
  $region24: #{qnet_forward.1} parent=0 // pred_region
    _
  $region25: #{qnet_forward.1} parent=0 // pred_fallthru
    _
  // Predicated region
  $region26: #{qnet_forward.1} parent=0 // pred_check
    _
  $region27: #{qnet_forward.1} parent=0 // pred_check_branch
    %27 = sbr.rel (0) target = $region29
  $region28: #{qnet_forward.1} parent=0 // pred_region
    _
  $region29: #{qnet_forward.1} parent=0 // pred_fallthru
    _
  // Predicated region
  $region30: #{qnet_forward.1} parent=0 // pred_check
    _
  $region31: #{qnet_forward.1} parent=0 // pred_check_branch
    %29 = sbr.rel (0) target = $region33
  $region32: #{qnet_forward.1} parent=0 // pred_region
    _
  $region33: #{qnet_forward.1} parent=0 // pred_fallthru
    _
  // Predicated region
  $region34: #{qnet_forward.1} parent=0 // pred_check
    _
  $region35: #{qnet_forward.1} parent=0 // pred_check_branch
    %31 = sbr.rel (0) target = $region37
  $region36: #{qnet_forward.1} parent=0 // pred_region
    _
  $region37: #{qnet_forward.1} parent=0 // pred_fallthru
    _
  %v32 = vld [vmem:[%s0] sm:$0xf]
  %v33 = vld [vmem:[%s1] sm:$0xf]
  %v34 = vld [vmem:[%s1 + $0x4] sm:$0xf]
  %v35 = vld [vmem:[%s1 + $0x8] sm:$0xf]
  %v36 = vld [vmem:[%s1 + $0xc] sm:$0xf]
  %v37 = vld [vmem:[%s1 + $0x10] sm:$0xf]
  %v38 = vld [vmem:[%s1 + $0x14] sm:$0xf]
  %v39 = vld [vmem:[%s1 + $0x18] sm:$0xf]
  %v40 = vld [vmem:[%s1 + $0x1c] sm:$0xf]
  %v41 = vld [vmem:[%s1 + $0x20] sm:$0xf]
  %v42 = vld [vmem:[%s1 + $0x24] sm:$0xf]
  %v43 = vld [vmem:[%s1 + $0x28] sm:$0xf]
  %v44 = vld [vmem:[%s1 + $0x2c] sm:$0xf]
  %v45 = vld [vmem:[%s1 + $0x30] sm:$0xf]
  %v46 = vld [vmem:[%s1 + $0x34] sm:$0xf]
  %v47 = vld [vmem:[%s1 + $0x38] sm:$0xf]
  %v48 = vld [vmem:[%s1 + $0x3c] sm:$0xf]
  %v49 = vld [vmem:[%s2] sm:$0x1]
  %v51 = vperm.slane %v49, 0
  %v69 = vunpack.c.l.b16 %v33
  %v70 = vunpack.c.l.b16 %v34
  %v71 = vunpack.c.l.b16 %v35
  %v72 = vunpack.c.l.b16 %v36
  %v73 = vunpack.c.l.b16 %v37
  %v74 = vunpack.c.l.b16 %v38
  %v75 = vunpack.c.l.b16 %v39
  %v76 = vunpack.c.l.b16 %v40
  %v77 = vunpack.c.l.b16 %v41
  %v78 = vunpack.c.l.b16 %v42
  %v79 = vunpack.c.l.b16 %v43
  %v80 = vunpack.c.l.b16 %v44
  %v81 = vunpack.c.l.b16 %v45
  %v82 = vunpack.c.l.b16 %v46
  %v83 = vunpack.c.l.b16 %v47
  %v84 = vunpack.c.l.b16 %v48
  %v85 = vpack.c.b16 %v70, %v69
  %v86 = vpack.c.b16 %v72, %v71
  %v87 = vpack.c.b16 %v74, %v73
  %v88 = vpack.c.b16 %v76, %v75
  %v89 = vpack.c.b16 %v78, %v77
  %v90 = vpack.c.b16 %v80, %v79
  %v91 = vpack.c.b16 %v82, %v81
  %v92 = vpack.c.b16 %v84, %v83
  %101 = vmatpush.bf16.msra.mxu0 %v92
  %102 = vmatpush.bf16.msra.mxu0 %v91
  %103 = vmatpush.bf16.msra.mxu0 %v90
  %104 = vmatpush.bf16.msra.mxu0 %v89
  %105 = vmatpush.bf16.msra.mxu0 %v88
  %106 = vmatpush.bf16.msra.mxu0 %v87
  %107 = vmatpush.bf16.msra.mxu0 %v86
  %108 = vmatpush.bf16.msra.mxu0 %v85
  %109 = vmatmul.bf16.gmra.mxu0 %v32
  %v110 = vpop.f32.mrf.mxu0
  %v111 = vadd.f32 %v51, %v110
  %v112 = vpop.f32.mrf.mxu0
  %113 = vdwg.mxu0
  %v114 = vmax.f32 %v111, 0.0
  %v115 = vpack.c.bf16 %v114, %v114
  %v116 = vld [vmem:[%s3] sm:$0xf]
  %v117 = vld [vmem:[%s3 + $0x4] sm:$0xf]
  %v118 = vld [vmem:[%s3 + $0x8] sm:$0xf]
  %v119 = vld [vmem:[%s3 + $0xc] sm:$0xf]
  %v120 = vld [vmem:[%s3 + $0x10] sm:$0xf]
  %v121 = vld [vmem:[%s3 + $0x14] sm:$0xf]
  %v122 = vld [vmem:[%s3 + $0x18] sm:$0xf]
  %v123 = vld [vmem:[%s3 + $0x1c] sm:$0xf]
  %v124 = vld [vmem:[%s3 + $0x20] sm:$0xf]
  %v125 = vld [vmem:[%s3 + $0x24] sm:$0xf]
  %v126 = vld [vmem:[%s3 + $0x28] sm:$0xf]
  %v127 = vld [vmem:[%s3 + $0x2c] sm:$0xf]
  %v128 = vld [vmem:[%s3 + $0x30] sm:$0xf]
  %v129 = vld [vmem:[%s3 + $0x34] sm:$0xf]
  %v130 = vld [vmem:[%s3 + $0x38] sm:$0xf]
  %v131 = vld [vmem:[%s3 + $0x3c] sm:$0xf]
  %v132 = vld [vmem:[%s4] sm:$0x1]
  %v134 = vperm.slane %v132, 0
  %v152 = vunpack.c.l.b16 %v116
  %v153 = vunpack.c.l.b16 %v117
  %v154 = vunpack.c.l.b16 %v118
  %v155 = vunpack.c.l.b16 %v119
  %v156 = vunpack.c.l.b16 %v120
  %v157 = vunpack.c.l.b16 %v121
  %v158 = vunpack.c.l.b16 %v122
  %v159 = vunpack.c.l.b16 %v123
  %v160 = vunpack.c.l.b16 %v124
  %v161 = vunpack.c.l.b16 %v125
  %v162 = vunpack.c.l.b16 %v126
  %v163 = vunpack.c.l.b16 %v127
  %v164 = vunpack.c.l.b16 %v128
  %v165 = vunpack.c.l.b16 %v129
  %v166 = vunpack.c.l.b16 %v130
  %v167 = vunpack.c.l.b16 %v131
  %v168 = vpack.c.b16 %v153, %v152
  %v169 = vpack.c.b16 %v155, %v154
  %v170 = vpack.c.b16 %v157, %v156
  %v171 = vpack.c.b16 %v159, %v158
  %v172 = vpack.c.b16 %v161, %v160
  %v173 = vpack.c.b16 %v163, %v162
  %v174 = vpack.c.b16 %v165, %v164
  %v175 = vpack.c.b16 %v167, %v166
  %184 = vmatpush.bf16.msra.mxu0 %v175
  %185 = vmatpush.bf16.msra.mxu0 %v174
  %186 = vmatpush.bf16.msra.mxu0 %v173
  %187 = vmatpush.bf16.msra.mxu0 %v172
  %188 = vmatpush.bf16.msra.mxu0 %v171
  %189 = vmatpush.bf16.msra.mxu0 %v170
  %190 = vmatpush.bf16.msra.mxu0 %v169
  %191 = vmatpush.bf16.msra.mxu0 %v168
  %192 = vmatmul.bf16.gmra.mxu0 %v115
  %v193 = vpop.f32.mrf.mxu0
  %v194 = vadd.f32 %v134, %v193
  %v195 = vpop.f32.mrf.mxu0
  %196 = vdwg.mxu0
  %v197 = vmax.f32 %v194, 0.0
  %v198 = vpack.c.bf16 %v197, %v197
  %v199 = vld [vmem:[%s5] sm:$0xf]
  %v200 = vld [vmem:[%s5 + $0x4] sm:$0xf]
  %v201 = vld [vmem:[%s5 + $0x8] sm:$0xf]
  %v202 = vld [vmem:[%s5 + $0xc] sm:$0xf]
  %v203 = vld [vmem:[%s5 + $0x10] sm:$0xf]
  %v204 = vld [vmem:[%s5 + $0x14] sm:$0xf]
  %v205 = vld [vmem:[%s5 + $0x18] sm:$0xf]
  %v206 = vld [vmem:[%s5 + $0x1c] sm:$0xf]
  %v207 = vld [vmem:[%s5 + $0x20] sm:$0xf]
  %v208 = vld [vmem:[%s5 + $0x24] sm:$0xf]
  %v209 = vld [vmem:[%s5 + $0x28] sm:$0xf]
  %v210 = vld [vmem:[%s5 + $0x2c] sm:$0xf]
  %v211 = vld [vmem:[%s5 + $0x30] sm:$0xf]
  %v212 = vld [vmem:[%s5 + $0x34] sm:$0xf]
  %v213 = vld [vmem:[%s5 + $0x38] sm:$0xf]
  %v214 = vld [vmem:[%s5 + $0x3c] sm:$0xf]
  %v215 = vld [vmem:[%s6] sm:$0x1]
  %v217 = vperm.slane %v215, 0
  %v235 = vunpack.c.l.b16 %v199
  %v236 = vunpack.c.l.b16 %v200
  %v237 = vunpack.c.l.b16 %v201
  %v238 = vunpack.c.l.b16 %v202
  %v239 = vunpack.c.l.b16 %v203
  %v240 = vunpack.c.l.b16 %v204
  %v241 = vunpack.c.l.b16 %v205
  %v242 = vunpack.c.l.b16 %v206
  %v243 = vunpack.c.l.b16 %v207
  %v244 = vunpack.c.l.b16 %v208
  %v245 = vunpack.c.l.b16 %v209
  %v246 = vunpack.c.l.b16 %v210
  %v247 = vunpack.c.l.b16 %v211
  %v248 = vunpack.c.l.b16 %v212
  %v249 = vunpack.c.l.b16 %v213
  %v250 = vunpack.c.l.b16 %v214
  %v251 = vpack.c.b16 %v236, %v235
  %v252 = vpack.c.b16 %v238, %v237
  %v253 = vpack.c.b16 %v240, %v239
  %v254 = vpack.c.b16 %v242, %v241
  %v255 = vpack.c.b16 %v244, %v243
  %v256 = vpack.c.b16 %v246, %v245
  %v257 = vpack.c.b16 %v248, %v247
  %v258 = vpack.c.b16 %v250, %v249
  %267 = vmatpush.bf16.msra.mxu0 %v258
  %268 = vmatpush.bf16.msra.mxu0 %v257
  %269 = vmatpush.bf16.msra.mxu0 %v256
  %270 = vmatpush.bf16.msra.mxu0 %v255
  %271 = vmatpush.bf16.msra.mxu0 %v254
  %272 = vmatpush.bf16.msra.mxu0 %v253
  %273 = vmatpush.bf16.msra.mxu0 %v252
  %274 = vmatpush.bf16.msra.mxu0 %v251
  %275 = vmatmul.bf16.gmra.mxu0 %v198
  %v276 = vpop.f32.mrf.mxu0
  %v277 = vadd.f32 %v217, %v276
  %v278 = vpop.f32.mrf.mxu0
  %279 = vdwg.mxu0
  %v280 = vmax.f32 %v277, 0.0
  %v281 = vpack.c.bf16 %v280, %v280
  %v282 = vld [vmem:[%s7] sm:$0xf]
  %v283 = vld [vmem:[%s7 + $0x4] sm:$0xf]
  %v284 = vld [vmem:[%s7 + $0x8] sm:$0xf]
  %v285 = vld [vmem:[%s7 + $0xc] sm:$0xf]
  %v286 = vld [vmem:[%s7 + $0x10] sm:$0xf]
  %v287 = vld [vmem:[%s7 + $0x14] sm:$0xf]
  %v288 = vld [vmem:[%s7 + $0x18] sm:$0xf]
  %v289 = vld [vmem:[%s7 + $0x1c] sm:$0xf]
  %v290 = vld [vmem:[%s7 + $0x20] sm:$0xf]
  %v291 = vld [vmem:[%s7 + $0x24] sm:$0xf]
  %v292 = vld [vmem:[%s7 + $0x28] sm:$0xf]
  %v293 = vld [vmem:[%s7 + $0x2c] sm:$0xf]
  %v294 = vld [vmem:[%s7 + $0x30] sm:$0xf]
  %v295 = vld [vmem:[%s7 + $0x34] sm:$0xf]
  %v296 = vld [vmem:[%s7 + $0x38] sm:$0xf]
  %v297 = vld [vmem:[%s7 + $0x3c] sm:$0xf]
  %v298 = vld [vmem:[%s8] sm:$0x1]
  %v300 = vperm.slane %v298, 0
  %v318 = vunpack.c.l.b16 %v282
  %v319 = vunpack.c.l.b16 %v283
  %v320 = vunpack.c.l.b16 %v284
  %v321 = vunpack.c.l.b16 %v285
  %v322 = vunpack.c.l.b16 %v286
  %v323 = vunpack.c.l.b16 %v287
  %v324 = vunpack.c.l.b16 %v288
  %v325 = vunpack.c.l.b16 %v289
  %v326 = vunpack.c.l.b16 %v290
  %v327 = vunpack.c.l.b16 %v291
  %v328 = vunpack.c.l.b16 %v292
  %v329 = vunpack.c.l.b16 %v293
  %v330 = vunpack.c.l.b16 %v294
  %v331 = vunpack.c.l.b16 %v295
  %v332 = vunpack.c.l.b16 %v296
  %v333 = vunpack.c.l.b16 %v297
  %v334 = vpack.c.b16 %v319, %v318
  %v335 = vpack.c.b16 %v321, %v320
  %v336 = vpack.c.b16 %v323, %v322
  %v337 = vpack.c.b16 %v325, %v324
  %v338 = vpack.c.b16 %v327, %v326
  %v339 = vpack.c.b16 %v329, %v328
  %v340 = vpack.c.b16 %v331, %v330
  %v341 = vpack.c.b16 %v333, %v332
  %350 = vmatpush.bf16.msra.mxu0 %v341
  %351 = vmatpush.bf16.msra.mxu0 %v340
  %352 = vmatpush.bf16.msra.mxu0 %v339
  %353 = vmatpush.bf16.msra.mxu0 %v338
  %354 = vmatpush.bf16.msra.mxu0 %v337
  %355 = vmatpush.bf16.msra.mxu0 %v336
  %356 = vmatpush.bf16.msra.mxu0 %v335
  %357 = vmatpush.bf16.msra.mxu0 %v334
  %358 = vmatmul.bf16.gmra.mxu0 %v281
  %v359 = vpop.f32.mrf.mxu0
  %v360 = vadd.f32 %v300, %v359
  %v361 = vpop.f32.mrf.mxu0
  %362 = vdwg.mxu0
  %363 = vst [vmem:[%s9] sm:$0xff] %v360
  // Predicated region
  $region38: #{qnet_forward.1} parent=0 // pred_check
    _
  $region39: #{qnet_forward.1} parent=0 // pred_check_branch
    %365 = sbr.rel (0) target = $region41
  $region40: #{qnet_forward.1} parent=0 // pred_region
    _
  $region41: #{qnet_forward.1} parent=0 // pred_fallthru
    _
  // Predicated region
  $region42: #{qnet_forward.1} parent=0 // pred_check
    _
  $region43: #{qnet_forward.1} parent=0 // pred_check_branch
    %367 = sbr.rel (0) target = $region45
  $region44: #{qnet_forward.1} parent=0 // pred_region
    _
  $region45: #{qnet_forward.1} parent=0 // pred_fallthru
    _

</llo_original>
